<compile_context>
chip_gen: v6e
topology: v6e:2x2x1
jax: 0.10.0
libtpu: 0.0.40
codegen_flags: <defaults>
</compile_context>

<pallas_src>
import jax
import jax.numpy as jnp
from jax import lax
from jax.experimental import pallas as pl
from jax.experimental.pallas import tpu as pltpu

HIDDEN = 50          # logical hidden size of the PyTorch module
HIDDEN_PAD = 128     # lane-aligned padded hidden
MAX_TILE_B = 8192    # rows per grid step at large batch (review: 4-8K)

# dot_general dimension numbers for A @ B^T (contract last dim of both).
_NT_DIMS = (((1,), (1,)), ((), ()))


def _round_up(x, m):
    return (x + m - 1) // m * m


def mlp_kernel(x_ref, w1_ref, b1_ref, wht_ref, bhc_ref, o_ref):
    # fc1 + ReLU: MXU matmul with f32 accumulation, f32 epilogue.
    # (.astype is a trace-time no-op when the weights are f32, e.g. on v5e.)
    x = x_ref[...].astype(w1_ref.dtype)
    h = jnp.dot(x, w1_ref[...], preferred_element_type=jnp.float32)
    h = jnp.maximum(h + b1_ref[...], 0.0)
    # Fused (out1|out2) head, computed TRANSPOSED:
    #   o^T = W_head^T @ h^T  == dot_general(wht, h) contracting hidden axes.
    # Result is (head_pad, tile_b): batch sits on the 128-lane axis, so the
    # store below is lane-dense (unmasked vst) and the HBM writeback is the
    # 16-row head, not a 128-wide padded row.
    ot = lax.dot_general(wht_ref[...], h.astype(wht_ref.dtype), _NT_DIMS,
                         preferred_element_type=jnp.float32)
    o_ref[...] = (ot + bhc_ref[...]).astype(o_ref.dtype)


def init_params(key, state_n, action_1, action_2, hidden=HIDDEN):
    """Raw (unpadded) params matching the PyTorch module's init semantics."""
    ks = jax.random.split(key, 6)
    # weight.data.normal_(0, 0.1); biases keep nn.Linear's default U(+-1/sqrt(fan_in)).
    w1 = 0.1 * jax.random.normal(ks[0], (state_n, hidden), jnp.float32)
    b1 = jax.random.uniform(ks[1], (hidden,), jnp.float32,
                            -1.0 / state_n ** 0.5, 1.0 / state_n ** 0.5)
    wo1 = 0.1 * jax.random.normal(ks[2], (hidden, action_1), jnp.float32)
    bo1 = jax.random.uniform(ks[3], (action_1,), jnp.float32,
                             -1.0 / hidden ** 0.5, 1.0 / hidden ** 0.5)
    wo2 = 0.1 * jax.random.normal(ks[4], (hidden, action_2), jnp.float32)
    bo2 = jax.random.uniform(ks[5], (action_2,), jnp.float32,
                             -1.0 / hidden ** 0.5, 1.0 / hidden ** 0.5)
    return (w1, b1, wo1, bo1, wo2, bo2)


def pack_params(raw, compute_dtype=jnp.float32, hidden_pad=HIDDEN_PAD):
    """Fuse + transpose the two heads; zero-pad feature dims (numerically inert)."""
    w1, b1, wo1, bo1, wo2, bo2 = raw
    state_n, hidden = w1.shape
    a1_dim, a2_dim = wo1.shape[1], wo2.shape[1]
    head = a1_dim + a2_dim
    head_pad = max(8, _round_up(head, 8))      # 10 -> 16 (sublane-aligned)
    assert hidden <= hidden_pad

    w1_p = jnp.zeros((state_n, hidden_pad), compute_dtype)
    w1_p = w1_p.at[:, :hidden].set(w1.astype(compute_dtype))
    b1_p = jnp.zeros((1, hidden_pad), jnp.float32).at[0, :hidden].set(b1)

    # Transposed fused head weight (head_pad, hidden_pad) + column bias.
    wh_t = jnp.concatenate([wo1, wo2], axis=1).T          # (head, hidden)
    wht_p = jnp.zeros((head_pad, hidden_pad), compute_dtype)
    wht_p = wht_p.at[:head, :hidden].set(wh_t.astype(compute_dtype))
    bh_p = jnp.zeros((head_pad, 1), jnp.float32)
    bh_p = bh_p.at[:head, 0].set(jnp.concatenate([bo1, bo2], axis=0))

    return dict(w1=w1_p, b1=b1_p, wht=wht_p, bh=bh_p,
                a1_dim=a1_dim, a2_dim=a2_dim)


def mlp_forward(state, packed, *, tile_b=None, out_dtype=jnp.float32):
    w1, b1, wht, bh = packed["w1"], packed["b1"], packed["wht"], packed["bh"]
    a1_dim, a2_dim = packed["a1_dim"], packed["a2_dim"]

    B, K = state.shape
    Hp = w1.shape[1]           # padded hidden (128)
    Np = wht.shape[0]          # padded fused head (16)

    if tile_b is None:
        if B <= 256:
            # Single full-batch tile: block shape == array shape, so no
            # (8,128) divisibility constraint and no input padding at all.
            tile_b = B
        else:
            # Big tiles amortize the ~0.35 us/step overhead; keep >= 2 grid
            # steps so "parallel" sharding engages both v7x TensorCores.
            tile_b = min(MAX_TILE_B, _round_up(pl.cdiv(B, 2), 128))
    grid = pl.cdiv(B, tile_b)
    # Ragged last block: input rows past B are unspecified, but they only
    # produce output COLUMNS past B which Pallas clips at writeback.

    out = pl.pallas_call(
        mlp_kernel,
        out_shape=jax.ShapeDtypeStruct((Np, B), out_dtype),
        grid_spec=pltpu.PrefetchScalarGridSpec(
            num_scalar_prefetch=0,
            grid=(grid,),
            in_specs=[
                pl.BlockSpec((tile_b, K), lambda i: (i, 0)),  # stream activations
                pl.BlockSpec((K, Hp), lambda i: (0, 0)),      # weights stay resident
                pl.BlockSpec((1, Hp), lambda i: (0, 0)),
                pl.BlockSpec((Np, Hp), lambda i: (0, 0)),
                pl.BlockSpec((Np, 1), lambda i: (0, 0)),
            ],
            out_specs=pl.BlockSpec((Np, tile_b), lambda i: (0, i)),
        ),
        compiler_params=pltpu.CompilerParams(
            dimension_semantics=("parallel",),
            vmem_limit_bytes=32 * 1024 * 1024,
        ),
    )(state, w1, b1, wht, bh)

    # Tiny wrapper transposes back to the PyTorch (B, action) layout; each is
    # a pass over only the real head columns (<= ~40 B/row), far cheaper than
    # the 448 B/row of padded writeback this layout removed from the kernel.
    out1 = out[:a1_dim, :].T
    out2 = out[a1_dim:a1_dim + a2_dim, :].T
    return out1, out2


def reference_forward(state, raw):
    w1, b1, wo1, bo1, wo2, bo2 = raw
    h = jnp.maximum(state @ w1 + b1, 0.0)
    return h @ wo1 + bo1, h @ wo2 + bo2


if __name__ == "__main__":
    key = jax.random.PRNGKey(0)
    k_x, k_p = jax.random.split(key)

    batch, state_n, action_1, action_2 = 8, 32, 4, 6
    state = jax.random.normal(k_x, (batch, state_n), jnp.float32)

    raw = init_params(k_p, state_n, action_1, action_2)
    # f32 keeps the module's numerics exactly; bf16 weights/outputs are an
    # opt-in for large-batch serving (loosen tolerances accordingly).
    packed = pack_params(raw)

    a1, a2 = jax.block_until_ready(mlp_forward(state, packed))

    r1, r2 = reference_forward(state, raw)
    assert a1.shape == (batch, action_1) and a2.shape == (batch, action_2)
    assert jnp.allclose(a1, r1, atol=1e-4, rtol=1e-4)
    assert jnp.allclose(a2, r2, atol=1e-4, rtol=1e-4)

    print("KERNEL_OK")
</pallas_src>

<mosaic_0001>
module attributes {stable_mosaic.version = 11 : i64} {
  func.func @mlp_kernel(%arg0: i32, %arg1: memref<8x32xf32, #tpu.memory_space<vmem>>, %arg2: memref<32x128xf32, #tpu.memory_space<vmem>>, %arg3: memref<1x128xf32, #tpu.memory_space<vmem>>, %arg4: memref<16x128xf32, #tpu.memory_space<vmem>>, %arg5: memref<16x1xf32, #tpu.memory_space<vmem>>, %arg6: memref<16x8xf32, #tpu.memory_space<vmem>>) attributes {dimension_semantics = [#tpu.dimension_semantics<parallel>], iteration_bounds = array<i64: 1>, scalar_prefetch = 0 : i64, scratch_operands = 0 : i64, tpu.core_type = #tpu.core_type<tc>, window_params = [{transform_indices = @transform_0, window_bounds = array<i64: 8, 32>}, {pipeline_mode = #tpu.pipeline_mode<synchronous>, transform_indices = @transform_1, window_bounds = array<i64: 32, 128>}, {pipeline_mode = #tpu.pipeline_mode<synchronous>, transform_indices = @transform_2, window_bounds = array<i64: 1, 128>}, {pipeline_mode = #tpu.pipeline_mode<synchronous>, transform_indices = @transform_3, window_bounds = array<i64: 16, 128>}, {pipeline_mode = #tpu.pipeline_mode<synchronous>, transform_indices = @transform_4, window_bounds = array<i64: 16, 1>}, {transform_indices = @transform_5, window_bounds = array<i64: 16, 8>}]} {
    %c0 = arith.constant 0 : index
    %c0_0 = arith.constant 0 : index
    %0 = vector.load %arg1[%c0, %c0_0] : memref<8x32xf32, #tpu.memory_space<vmem>>, vector<8x32xf32>
    %c0_1 = arith.constant 0 : index
    %c0_2 = arith.constant 0 : index
    %1 = vector.load %arg2[%c0_1, %c0_2] : memref<32x128xf32, #tpu.memory_space<vmem>>, vector<32x128xf32>
    %cst = arith.constant dense<0.000000e+00> : vector<8x128xf32>
    %2 = tpu.matmul %0, %1, %cst {dimension_numbers = #tpu.dot_dimension_numbers<[1], [0], [0], [1], [0, 0, 1, 1], [], []>} : vector<8x32xf32>, vector<32x128xf32>, vector<8x128xf32> -> vector<8x128xf32>
    %c0_3 = arith.constant 0 : index
    %c0_4 = arith.constant 0 : index
    %3 = vector.load %arg3[%c0_3, %c0_4] : memref<1x128xf32, #tpu.memory_space<vmem>>, vector<1x128xf32>
    %4 = vector.broadcast %3 : vector<1x128xf32> to vector<8x128xf32>
    %5 = arith.addf %2, %4 : vector<8x128xf32>
    %cst_5 = arith.constant 0.000000e+00 : f32
    %6 = vector.broadcast %cst_5 : f32 to vector<8x128xf32>
    %7 = arith.maximumf %5, %6 : vector<8x128xf32>
    %c0_6 = arith.constant 0 : index
    %c0_7 = arith.constant 0 : index
    %8 = vector.load %arg4[%c0_6, %c0_7] : memref<16x128xf32, #tpu.memory_space<vmem>>, vector<16x128xf32>
    %cst_8 = arith.constant dense<0.000000e+00> : vector<16x8xf32>
    %9 = tpu.matmul %8, %7, %cst_8 {dimension_numbers = #tpu.dot_dimension_numbers<[1], [1], [0], [0], [0, 0, 1, 0], [], []>} : vector<16x128xf32>, vector<8x128xf32>, vector<16x8xf32> -> vector<16x8xf32>
    %c0_9 = arith.constant 0 : index
    %c0_10 = arith.constant 0 : index
    %10 = vector.load %arg5[%c0_9, %c0_10] : memref<16x1xf32, #tpu.memory_space<vmem>>, vector<16x1xf32>
    %11 = vector.broadcast %10 : vector<16x1xf32> to vector<16x8xf32>
    %12 = arith.addf %9, %11 : vector<16x8xf32>
    %c0_11 = arith.constant 0 : index
    %c0_12 = arith.constant 0 : index
    %13 = vector.load %arg6[%c0_11, %c0_12] : memref<16x8xf32, #tpu.memory_space<vmem>>, vector<16x8xf32>
    tpu.vector_store %arg6[%c0_11, %c0_12], %12 {strides = array<i32>} : memref<16x8xf32, #tpu.memory_space<vmem>>, vector<16x8xf32>,
    return
  }
  func.func @transform_0(%arg0: i32) -> (i32, i32) {
    %c0_i32 = arith.constant 0 : i32
    %c0_i32_0 = arith.constant 0 : i32
    return %arg0, %c0_i32 : i32, i32
  }
  func.func @transform_1(%arg0: i32) -> (i32, i32) {
    %c0_i32 = arith.constant 0 : i32
    %c0_i32_0 = arith.constant 0 : i32
    %c0_i32_1 = arith.constant 0 : i32
    return %c0_i32, %c0_i32_0 : i32, i32
  }
  func.func @transform_2(%arg0: i32) -> (i32, i32) {
    %c0_i32 = arith.constant 0 : i32
    %c0_i32_0 = arith.constant 0 : i32
    %c0_i32_1 = arith.constant 0 : i32
    return %c0_i32, %c0_i32_0 : i32, i32
  }
  func.func @transform_3(%arg0: i32) -> (i32, i32) {
    %c0_i32 = arith.constant 0 : i32
    %c0_i32_0 = arith.constant 0 : i32
    %c0_i32_1 = arith.constant 0 : i32
    return %c0_i32, %c0_i32_0 : i32, i32
  }
  func.func @transform_4(%arg0: i32) -> (i32, i32) {
    %c0_i32 = arith.constant 0 : i32
    %c0_i32_0 = arith.constant 0 : i32
    %c0_i32_1 = arith.constant 0 : i32
    return %c0_i32, %c0_i32_0 : i32, i32
  }
  func.func @transform_5(%arg0: i32) -> (i32, i32) {
    %c0_i32 = arith.constant 0 : i32
    %c0_i32_0 = arith.constant 0 : i32
    return %c0_i32, %arg0 : i32, i32
  }
}

</mosaic_0001>

<llo_original>
// kernel: tpu_custom_call.1
$region0: #{tpu_custom_call.1}
  #allocation0 [shape = 'u32[]', space=smem, size = 0x4, offset = 0x4, fixed_abs, tag = 'smem constant byte address 0x4 - core index']
  #allocation1 [shape = 'u32[144,128]{1,0:T(1,128)}', space=vmem, size = 0x12000, scoped, tag = 'internal scratch']
  %s0 = inlined_call_operand.hbm [shape: f32[8,32], index: 0, kind: input, shape index: {}]
  %s1 = inlined_call_operand.hbm [shape: f32[32,128], index: 1, kind: input, shape index: {}]
  %s2 = inlined_call_operand.vmem [shape: f32[1,128], index: 2, kind: input, shape index: {}]
  %s3 = inlined_call_operand.vmem [shape: f32[16,128], index: 3, kind: input, shape index: {}]
  %s4 = inlined_call_operand.vmem [shape: f32[16,1], index: 4, kind: input, shape index: {}]
  %s5 = inlined_call_operand.vmem [shape: f32[16,8], index: 5, kind: output, shape index: {}]
  %s6 = sld [smem:[#allocation0]]
  $region38: #{tpu_custom_call.1} parent=0
    _
  %s8 = ssub.s32 1, %s6
  %s9 = scalar_select 0, %s8, %s6
  $region1: #{tpu_custom_call.1} parent=0
    #allocation2 [shape = 'u8[4096]{0}', space=vmem, size = 0x1000, scoped, tag = 'input window, operand 0, single buffered']
    #allocation3 [shape = 's32[1]{0}', space=sflag, size = 0x4, scoped, tag = 'scoped memory for tpu_custom_call.1']
    #allocation4 [shape = 'u8[16384]{0}', space=vmem, size = 0x4000, scoped, tag = 'input window, operand 1, single buffered']
    #allocation5 [shape = 's32[1]{0}', space=sflag, size = 0x4, scoped, tag = 'scoped memory for tpu_custom_call.1']
    %10 = vsyncpa [#allocation3], 0
    %11 = vsyncpa [#allocation5], 0
    // Predicated region
    $region2: #{tpu_custom_call.1} parent=1 // pred_check
      _
    $region3: #{tpu_custom_call.1} parent=1 // pred_check_branch
      %13 = sbr.rel (0) target = $region5
    $region4: #{tpu_custom_call.1} parent=1 // pred_region
      %s15 = ssub.s32 128, 128
      %16 = vsyncadd [#allocation3], %s15
      %s18 = sshll.u32 [#allocation2], 4
      %s19 = int_to_ptr.vmem [resolvable:$true] %s18
      %21 = dma.hbm_to_vmem [thread:$0]  %s0, 128, %s19, [#allocation3]
    $region5: #{tpu_custom_call.1} parent=1 // pred_fallthru
      _
    // Predicated region
    $region6: #{tpu_custom_call.1} parent=1 // pred_check
      _
    $region7: #{tpu_custom_call.1} parent=1 // pred_check_branch
      %23 = sbr.rel (0) target = $region9
    $region8: #{tpu_custom_call.1} parent=1 // pred_region
      %s25 = ssub.s32 512, 512
      %26 = vsyncadd [#allocation5], %s25
      %s27 = sshll.u32 [#allocation4], 4
      %s28 = int_to_ptr.vmem [resolvable:$true] %s27
      %33 = dma.hbm_to_vmem [thread:$0]  %s1, 512, %s28, [#allocation5], 128, 128, 8
    $region9: #{tpu_custom_call.1} parent=1 // pred_fallthru
      _
    // Predicated region
    $region10: #{tpu_custom_call.1} parent=1 // pred_check
      _
    $region11: #{tpu_custom_call.1} parent=1 // pred_check_branch
      %35 = sbr.rel (0) target = $region13
    $region12: #{tpu_custom_call.1} parent=1 // pred_region
      _
    $region13: #{tpu_custom_call.1} parent=1 // pred_fallthru
      _
    // Predicated region
    $region14: #{tpu_custom_call.1} parent=1 // pred_check
      _
    $region15: #{tpu_custom_call.1} parent=1 // pred_check_branch
      %37 = sbr.rel (0) target = $region17
    $region16: #{tpu_custom_call.1} parent=1 // pred_region
      _
    $region17: #{tpu_custom_call.1} parent=1 // pred_fallthru
      _
    // Predicated region
    $region18: #{tpu_custom_call.1} parent=1 // pred_check
      _
    $region19: #{tpu_custom_call.1} parent=1 // pred_check_branch
      %39 = sbr.rel (0) target = $region21
    $region20: #{tpu_custom_call.1} parent=1 // pred_region
      _
    $region21: #{tpu_custom_call.1} parent=1 // pred_fallthru
      _
    // Predicated region
    $region22: #{tpu_custom_call.1} parent=1 // pred_check
      _
    $region23: #{tpu_custom_call.1} parent=1 // pred_check_branch
      %41 = sbr.rel (0) target = $region25
    $region24: #{tpu_custom_call.1} parent=1 // pred_region
      %42 = dma.done [#allocation3], 128
    $region25: #{tpu_custom_call.1} parent=1 // pred_fallthru
      _
    // Predicated region
    $region26: #{tpu_custom_call.1} parent=1 // pred_check
      _
    $region27: #{tpu_custom_call.1} parent=1 // pred_check_branch
      %44 = sbr.rel (0) target = $region29
    $region28: #{tpu_custom_call.1} parent=1 // pred_region
      %45 = dma.done [#allocation5], 512
    $region29: #{tpu_custom_call.1} parent=1 // pred_fallthru
      _
    %v46 = vld [vmem:[#allocation2] sm:$0xff]
    %v47 = vld [vmem:[#allocation4] sm:$0xff]
    %v48 = vld [vmem:[#allocation4 + $0x8] sm:$0xff]
    %v49 = vld [vmem:[#allocation4 + $0x10] sm:$0xff]
    %v50 = vld [vmem:[#allocation4 + $0x18] sm:$0xff]
    %v51 = vld [vmem:[%s2] sm:$0x1]
    %v53 = vlaneseq
    %v54 = vshrl.u32 %v53, 7
    %v55 = vsub.s32 0, %v54
    %v56 = vrot.slane %v51, %v55
    %vm58 = vcmask 261120
    %v60 = vsel %vm58, %v46, 0
    %62 = vmatprep.subr.mxu0 0.0
    %63 = vmatpush1.msra.mxu0 0.0
    %64 = vmatprep.subr.mxu0 0.0
    %65 = vmatpush1.msra.mxu0 0.0
    %66 = vmatprep.subr.mxu0 0.0
    %67 = vmatpush1.msra.mxu0 0.0
    %68 = vmatprep.subr.mxu0 0.0
    %69 = vmatpush1.msra.mxu0 0.0
    %70 = vmatprep.subr.mxu0 0.0
    %71 = vmatpush1.msra.mxu0 0.0
    %72 = vmatprep.subr.mxu0 0.0
    %73 = vmatpush1.msra.mxu0 0.0
    %74 = vmatprep.subr.mxu0 0.0
    %75 = vmatpush1.msra.mxu0 0.0
    %76 = vmatprep.subr.mxu0 0.0
    %77 = vmatpush1.msra.mxu0 0.0
    %78 = vmatprep.subr.mxu0 0.0
    %79 = vmatpush1.msra.mxu0 0.0
    %80 = vmatprep.subr.mxu0 0.0
    %81 = vmatpush1.msra.mxu0 0.0
    %82 = vmatprep.subr.mxu0 0.0
    %83 = vmatpush1.msra.mxu0 0.0
    %84 = vmatprep.subr.mxu0 0.0
    %85 = vmatpush1.msra.mxu0 0.0
    %86 = vmatprep.subr.mxu0 0.0
    %87 = vmatpush1.msra.mxu0 %v50
    %88 = vmatprep.subr.mxu0 0.0
    %89 = vmatpush1.msra.mxu0 %v49
    %90 = vmatprep.subr.mxu0 0.0
    %91 = vmatpush1.msra.mxu0 %v48
    %92 = vmatprep.subr.mxu0 0.0
    %93 = vmatpush1.msra.mxu0 %v47
    %94 = vmatprep.subr.mxu0 0.0
    %95 = vmatpush2.msra.mxu0 0.0
    %96 = vmatprep.subr.mxu0 0.0
    %97 = vmatpush2.msra.mxu0 0.0
    %98 = vmatprep.subr.mxu0 0.0
    %99 = vmatpush2.msra.mxu0 0.0
    %100 = vmatprep.subr.mxu0 0.0
    %101 = vmatpush2.msra.mxu0 0.0
    %102 = vmatprep.subr.mxu0 0.0
    %103 = vmatpush2.msra.mxu0 0.0
    %104 = vmatprep.subr.mxu0 0.0
    %105 = vmatpush2.msra.mxu0 0.0
    %106 = vmatprep.subr.mxu0 0.0
    %107 = vmatpush2.msra.mxu0 0.0
    %108 = vmatprep.subr.mxu0 0.0
    %109 = vmatpush2.msra.mxu0 0.0
    %110 = vmatprep.subr.mxu0 0.0
    %111 = vmatpush2.msra.mxu0 0.0
    %112 = vmatprep.subr.mxu0 0.0
    %113 = vmatpush2.msra.mxu0 0.0
    %114 = vmatprep.subr.mxu0 0.0
    %115 = vmatpush2.msra.mxu0 0.0
    %116 = vmatprep.subr.mxu0 0.0
    %117 = vmatpush2.msra.mxu0 0.0
    %118 = vmatprep.subr.mxu0 0.0
    %119 = vmatpush2.msra.mxu0 0.0
    %120 = vmatprep.subr.mxu0 0.0
    %121 = vmatpush2.msra.mxu0 0.0
    %122 = vmatprep.subr.mxu0 0.0
    %123 = vmatpush2.msra.mxu0 0.0
    %124 = vmatprep.subr.mxu0 0.0
    %125 = vmatpush2.msra.mxu0 0.0
    %126 = vmatprep.mubr.f32.mxu0 0.0
    %127 = vmatmul.mubr.f32.gmra.mxu0 %v60
    %v128 = vpop.f32.mrf.mxu0
    %v129 = vadd.f32 %v56, %v128
    %v130 = vpop.f32.mrf.mxu0
    %131 = vdwg.mxu0
    %v132 = vmax.f32 %v129, 0.0
    %v133 = vld [vmem:[%s3] sm:$0xff]
    %v134 = vld [vmem:[%s3 + $0x8] sm:$0xff]
    %v135 = vld [vmem:[%s4] sm:$0xff]
    %v136 = vld [vmem:[%s4 + $0x8] sm:$0xff]
    %138 = vset.pattern.permute.xlu0 0
    %139 = vperm.xlu0 %138, %v135
    %v140 = vpop.permute.xlu0 %139
    %143 = vset.pattern.permute.xlu0 0
    %144 = vperm.xlu0 %143, %v136
    %v145 = vpop.permute.xlu0 %144
    %147 = vmatprep.subr.mxu0 0.0
    %148 = vmatpush1.xpose.msra.mxu0 0.0
    %149 = vmatprep.subr.mxu0 0.0
    %150 = vmatpush1.xpose.msra.mxu0 0.0
    %151 = vmatprep.subr.mxu0 0.0
    %152 = vmatpush1.xpose.msra.mxu0 0.0
    %153 = vmatprep.subr.mxu0 0.0
    %154 = vmatpush1.xpose.msra.mxu0 0.0
    %155 = vmatprep.subr.mxu0 0.0
    %156 = vmatpush1.xpose.msra.mxu0 0.0
    %157 = vmatprep.subr.mxu0 0.0
    %158 = vmatpush1.xpose.msra.mxu0 0.0
    %159 = vmatprep.subr.mxu0 0.0
    %160 = vmatpush1.xpose.msra.mxu0 0.0
    %161 = vmatprep.subr.mxu0 0.0
    %162 = vmatpush1.xpose.msra.mxu0 0.0
    %163 = vmatprep.subr.mxu0 0.0
    %164 = vmatpush1.xpose.msra.mxu0 0.0
    %165 = vmatprep.subr.mxu0 0.0
    %166 = vmatpush1.xpose.msra.mxu0 0.0
    %167 = vmatprep.subr.mxu0 0.0
    %168 = vmatpush1.xpose.msra.mxu0 0.0
    %169 = vmatprep.subr.mxu0 0.0
    %170 = vmatpush1.xpose.msra.mxu0 0.0
    %171 = vmatprep.subr.mxu0 0.0
    %172 = vmatpush1.xpose.msra.mxu0 0.0
    %173 = vmatprep.subr.mxu0 0.0
    %174 = vmatpush1.xpose.msra.mxu0 0.0
    %175 = vmatprep.subr.mxu0 0.0
    %176 = vmatpush1.xpose.msra.mxu0 0.0
    %177 = vmatprep.subr.mxu0 0.0
    %178 = vmatpush1.xpose.msra.mxu0 %v132
    %179 = vmatprep.subr.mxu0 0.0
    %180 = vmatpush2.xpose.msra.mxu0 0.0
    %181 = vmatprep.subr.mxu0 0.0
    %182 = vmatpush2.xpose.msra.mxu0 0.0
    %183 = vmatprep.subr.mxu0 0.0
    %184 = vmatpush2.xpose.msra.mxu0 0.0
    %185 = vmatprep.subr.mxu0 0.0
    %186 = vmatpush2.xpose.msra.mxu0 0.0
    %187 = vmatprep.subr.mxu0 0.0
    %188 = vmatpush2.xpose.msra.mxu0 0.0
    %189 = vmatprep.subr.mxu0 0.0
    %190 = vmatpush2.xpose.msra.mxu0 0.0
    %191 = vmatprep.subr.mxu0 0.0
    %192 = vmatpush2.xpose.msra.mxu0 0.0
    %193 = vmatprep.subr.mxu0 0.0
    %194 = vmatpush2.xpose.msra.mxu0 0.0
    %195 = vmatprep.subr.mxu0 0.0
    %196 = vmatpush2.xpose.msra.mxu0 0.0
    %197 = vmatprep.subr.mxu0 0.0
    %198 = vmatpush2.xpose.msra.mxu0 0.0
    %199 = vmatprep.subr.mxu0 0.0
    %200 = vmatpush2.xpose.msra.mxu0 0.0
    %201 = vmatprep.subr.mxu0 0.0
    %202 = vmatpush2.xpose.msra.mxu0 0.0
    %203 = vmatprep.subr.mxu0 0.0
    %204 = vmatpush2.xpose.msra.mxu0 0.0
    %205 = vmatprep.subr.mxu0 0.0
    %206 = vmatpush2.xpose.msra.mxu0 0.0
    %207 = vmatprep.subr.mxu0 0.0
    %208 = vmatpush2.xpose.msra.mxu0 0.0
    %209 = vmatprep.subr.mxu0 0.0
    %210 = vmatpush2.xpose.msra.mxu0 0.0
    %211 = vmatprep.mubr.f32.mxu0 0.0
    %212 = vmatmul.mubr.f32.gmra.mxu0 %v133
    %v213 = vpop.f32.mrf.mxu0
    %v214 = vadd.f32 %v140, %v213
    %v215 = vpop.f32.mrf.mxu0
    %216 = vmatprep.mubr.f32.mxu0 0.0
    %217 = vmatmul.mubr.f32.gmra.mxu0 %v134
    %v218 = vpop.f32.mrf.mxu0
    %v219 = vadd.f32 %v145, %v218
    %v220 = vpop.f32.mrf.mxu0
    %221 = vdwg.mxu0
    %vm222 = vcmask 64512
    %223 = vst.msk [vmem:[%s5] sm:$0xff] %vm222, %v214
    %224 = vst.msk [vmem:[%s5 + $0x8] sm:$0xff] %vm222, %v219
    // Predicated region
    $region30: #{tpu_custom_call.1} parent=1 // pred_check
      _
    $region31: #{tpu_custom_call.1} parent=1 // pred_check_branch
      %226 = sbr.rel (0) target = $region33
    $region32: #{tpu_custom_call.1} parent=1 // pred_region
      _
    $region33: #{tpu_custom_call.1} parent=1 // pred_fallthru
      _
    // Predicated region
    $region34: #{tpu_custom_call.1} parent=1 // pred_check
      _
    $region35: #{tpu_custom_call.1} parent=1 // pred_check_branch
      %228 = sbr.rel (0) target = $region37
    $region36: #{tpu_custom_call.1} parent=1 // pred_region
      _
    $region37: #{tpu_custom_call.1} parent=1 // pred_fallthru
      _
    %229 = vsyncpa [#allocation3], 1
    %230 = vsyncpa [#allocation5], 1

</llo_original>
